<compile_context>
chip_gen: v5e
topology: v5e:2x2
jax: 0.10.0
libtpu: 0.0.40
codegen_flags: <defaults>
</compile_context>

<pallas_src>
import functools

import jax
import jax.numpy as jnp
import numpy as np
from jax.experimental import pallas as pl
from jax.experimental.pallas import tpu as pltpu


# --------------------------------------------------------------------------- #
# Kernel
# --------------------------------------------------------------------------- #
def _postprocess_kernel(logits_ref, posmap_ref, bbox_ref, prob_ref, boxes_ref,
                        *, not_to_xyxy, sigmoid_in_f32, qt, c_valid, q_valid,
                        c_pad, q_pad):
    # ---- prob_to_label = sigmoid(logits) @ positive_maps^T, stored (C, Q) ----
    logits = logits_ref[...]                                   # (bblk, Qt, T) bf16
    if sigmoid_in_f32:
        # v5e / unknown: no native bf16 EUP -> compute sigmoid in f32.
        p16 = jax.nn.sigmoid(logits.astype(jnp.float32)).astype(jnp.bfloat16)
    else:
        # v6e / v7x: bf16 VPU/EUP -> skip the f32 upcast round-trip.
        p16 = jax.nn.sigmoid(logits)                           # (bblk, Qt, T) bf16
    pos16 = posmap_ref[...]                                    # (bblk, C_pad, T) bf16
    # NT-form batched matmul: contract the shared token dim, f32 accumulation.
    prob_cq = jax.lax.dot_general(
        pos16, p16,
        dimension_numbers=(((2,), (2,)), ((0,), (0,))),
        preferred_element_type=jnp.float32)                    # (bblk, C_pad, Qt)

    # Padded class rows / query lanes must never be selected by top-k.
    if (c_valid < c_pad) or (q_valid < q_pad):
        c_idx = jax.lax.broadcasted_iota(jnp.int32, prob_cq.shape, 1)
        q_idx = (jax.lax.broadcasted_iota(jnp.int32, prob_cq.shape, 2)
                 + pl.program_id(1) * qt)
        valid = (c_idx < c_valid) & (q_idx < q_valid)
        prob_cq = jnp.where(valid, prob_cq, -1.0)

    prob_ref[...] = prob_cq.astype(prob_ref.dtype)             # lane-dense bf16 store

    # ---- box_cxcywh_to_xyxy on the (4, Q) sublane layout ----
    b = bbox_ref[...].astype(jnp.float32)                      # (bblk, 4, Qt) cxcywh
    if not_to_xyxy:
        boxes_ref[...] = b.astype(boxes_ref.dtype)
    else:
        cx = b[:, 0:1, :]
        cy = b[:, 1:2, :]
        w = b[:, 2:3, :]
        h = b[:, 3:4, :]
        # Direct sub-ref stores (no concatenate materialization).
        boxes_ref[:, 0:1, :] = (cx - 0.5 * w).astype(boxes_ref.dtype)
        boxes_ref[:, 1:2, :] = (cy - 0.5 * h).astype(boxes_ref.dtype)
        boxes_ref[:, 2:3, :] = (cx + 0.5 * w).astype(boxes_ref.dtype)
        boxes_ref[:, 3:4, :] = (cy + 0.5 * h).astype(boxes_ref.dtype)


# --------------------------------------------------------------------------- #
# Tiling / budget helpers
# --------------------------------------------------------------------------- #
def _round_up(x, m):
    return ((x + m - 1) // m) * m


def _tpu_budgets():
    """Per-generation block / VMEM budgets (conservative fallback if unknown)."""
    kind = ""
    try:
        kind = jax.devices()[0].device_kind.lower()
    except Exception:  # pragma: no cover - device query is best-effort
        pass
    is_v5e = ("v5 lite" in kind) or ("v5e" in kind) or ("v5lite" in kind)
    is_v6 = "v6" in kind
    is_v7 = ("v7" in kind) or ("tpu7" in kind)
    if is_v6:    # 128 MiB VMEM, bf16 VPU/EUP
        return dict(max_block_bytes=8 << 20, vmem_limit_bytes=64 << 20,
                    sigmoid_in_f32=False)
    if is_v5e:   # 128 MiB VMEM, no bf16 VPU/EUP
        return dict(max_block_bytes=6 << 20, vmem_limit_bytes=48 << 20,
                    sigmoid_in_f32=True)
    if is_v7:    # 64 MiB physical VMEM -> tight, intermediate-aware budget
        return dict(max_block_bytes=3 << 20, vmem_limit_bytes=32 << 20,
                    sigmoid_in_f32=False)
    # Unknown generation: safest settings everywhere.
    return dict(max_block_bytes=3 << 20, vmem_limit_bytes=32 << 20,
                sigmoid_in_f32=True)


def _block_footprint_bytes(bblk, qt, t_pad, c_pad, sigmoid_in_f32):
    """Per-grid-step VMEM estimate: double-buffered I/O streams + the large
    in-kernel intermediates (sigmoid result, f32 accumulator, f32 upcast pair
    on the f32-sigmoid path)."""
    io = 2 * (bblk * qt * t_pad * 2        # logits bf16 in
              + bblk * c_pad * t_pad * 2   # positive maps bf16 in
              + bblk * 4 * qt * 4          # bbox f32 in
              + bblk * c_pad * qt * 2      # prob bf16 out
              + bblk * 4 * qt * 4)         # boxes f32 out
    inter = bblk * qt * t_pad * 2 + bblk * c_pad * qt * 4
    if sigmoid_in_f32:
        inter += 2 * bblk * qt * t_pad * 4
    return io + inter


def _choose_tiling(B, Q, t_pad, c_pad, sigmoid_in_f32, max_block_bytes,
                   min_steps=4):
    """Pick (Qt, Q_pad, bblk, B_pad) so blocks fit the budget and the grid has
    enough steps for pipelining (and the v7x megacore)."""
    q128 = _round_up(Q, 128)
    qt = 128
    for cand in (512, 256, 128):
        if (cand <= q128 and q128 % cand == 0 and
                _block_footprint_bytes(1, cand, t_pad, c_pad,
                                       sigmoid_in_f32) <= max_block_bytes):
            qt = cand
            break
    q_pad = q128
    q_steps = q_pad // qt

    need_steps = min(min_steps, B * q_steps)
    bblk = 1
    for cand in range(B, 0, -1):
        total_steps = (-(-B // cand)) * q_steps          # ceil(B / cand) * q_steps
        if total_steps < need_steps:
            continue
        if _block_footprint_bytes(cand, qt, t_pad, c_pad,
                                  sigmoid_in_f32) <= max_block_bytes:
            bblk = cand
            break
    b_pad = _round_up(B, bblk)
    return qt, q_pad, bblk, b_pad


# --------------------------------------------------------------------------- #
# Wrapper (forward pass)
# --------------------------------------------------------------------------- #
def postprocess_coco(out_logits, out_bbox, target_sizes, positive_maps,
                     num_select, not_to_xyxy=False):
    B, Q, T = out_logits.shape
    C = positive_maps.shape[1]
    assert out_logits.shape[0] == target_sizes.shape[0]
    assert target_sizes.shape[1] == 2
    assert num_select <= C * Q, "num_select must not exceed the candidate count"

    budgets = _tpu_budgets()
    c_pad = _round_up(C, 8)
    t_pad = _round_up(T, 128)
    qt, q_pad, bblk, b_pad = _choose_tiling(
        B, Q, t_pad, c_pad, budgets["sigmoid_in_f32"], budgets["max_block_bytes"])

    # ---- host-side layout & padding (cheap relative to the kernel streams) ----
    logits16 = jnp.pad(out_logits.astype(jnp.bfloat16),
                       ((0, b_pad - B), (0, q_pad - Q), (0, t_pad - T)))
    pos16 = jnp.pad(positive_maps.astype(jnp.bfloat16),
                    ((0, b_pad - B), (0, c_pad - C), (0, t_pad - T)))
    bbox_t = jnp.transpose(out_bbox.astype(jnp.float32), (0, 2, 1))      # (B, 4, Q)
    bbox_t = jnp.pad(bbox_t, ((0, b_pad - B), (0, 0), (0, q_pad - Q)))

    grid = (b_pad // bblk, q_pad // qt)
    kernel = functools.partial(
        _postprocess_kernel, not_to_xyxy=not_to_xyxy,
        sigmoid_in_f32=budgets["sigmoid_in_f32"], qt=qt,
        c_valid=C, q_valid=Q, c_pad=c_pad, q_pad=q_pad)

    prob_cq, boxes_4q = pl.pallas_call(
        kernel,
        out_shape=(jax.ShapeDtypeStruct((b_pad, c_pad, q_pad), jnp.bfloat16),
                   jax.ShapeDtypeStruct((b_pad, 4, q_pad), jnp.float32)),
        grid_spec=pltpu.PrefetchScalarGridSpec(
            num_scalar_prefetch=0,
            grid=grid,
            in_specs=[
                pl.BlockSpec((bblk, qt, t_pad), lambda i, j: (i, j, 0)),
                # Constant along the Q axis -> stays resident across Q tiles.
                pl.BlockSpec((bblk, c_pad, t_pad), lambda i, j: (i, 0, 0)),
                pl.BlockSpec((bblk, 4, qt), lambda i, j: (i, 0, j)),
            ],
            out_specs=[
                pl.BlockSpec((bblk, c_pad, qt), lambda i, j: (i, 0, j)),
                pl.BlockSpec((bblk, 4, qt), lambda i, j: (i, 0, j)),
            ],
        ),
        compiler_params=pltpu.CompilerParams(
            dimension_semantics=("parallel", "parallel"),
            vmem_limit_bytes=budgets["vmem_limit_bytes"]),
    )(logits16, pos16, bbox_t)

    # ---- selection / gather glue (top-k is a sort; kept in plain JAX) ----
    # prob is (C, Q)-major, so the flat index decodes as (label, query); the
    # selected set matches torch, only tie-break order can differ (benign).
    flat = prob_cq[:B].reshape(B, c_pad * q_pad)
    scores, topk_idx = jax.lax.top_k(flat, num_select)
    labels = topk_idx // q_pad
    topk_boxes = topk_idx % q_pad

    boxes_4q = boxes_4q[:B]
    gather_b = jnp.broadcast_to(topk_boxes[:, None, :], (B, 4, num_select))
    boxes_sel = jnp.transpose(
        jnp.take_along_axis(boxes_4q, gather_b, axis=2), (0, 2, 1))      # (B, ns, 4)

    prob_b = prob_cq[:B, :C]
    gather_p = jnp.broadcast_to(topk_boxes[:, None, :], (B, C, num_select))
    topk_prob = jnp.transpose(
        jnp.take_along_axis(prob_b, gather_p, axis=2), (0, 2, 1))        # (B, ns, C)

    # Scale after the gather, exactly as the torch module does.
    img_h = target_sizes[:, 0]
    img_w = target_sizes[:, 1]
    scale_fct = jnp.stack([img_w, img_h, img_w, img_h], axis=1).astype(jnp.float32)
    boxes_sel = boxes_sel * scale_fct[:, None, :]

    return {'scores': scores.astype(jnp.float32),
            'labels': labels,
            'boxes': boxes_sel,
            'prob': topk_prob.astype(jnp.float32)}


# --------------------------------------------------------------------------- #
# Test helpers
# --------------------------------------------------------------------------- #
def build_positive_maps(B, C, T):
    """Deterministic stand-in for the tokenizer-derived positive maps.

    Each (batch, class) row is a normalized indicator over a small token span,
    mirroring create_positive_map_from_span's row-normalized output.
    """
    tok = jnp.arange(T)[None, None, :]
    start = (jnp.arange(C)[None, :, None] * 7
             + jnp.arange(B)[:, None, None] * 3) % (T - 4)
    mask = ((tok >= start) & (tok < start + 3)).astype(jnp.float32)
    return mask / jnp.clip(mask.sum(-1, keepdims=True), 1e-6)


def postprocess_coco_ref(out_logits, out_bbox, target_sizes, positive_maps,
                         num_select, not_to_xyxy=False):
    """Pure-JAX reference mirroring the torch forward.

    Precision mirrors the kernel's HBM streams (bf16 logits / positive maps,
    f32-accumulated class projection, bf16 prob writeback); the deviation from
    the torch f32 path is bounded by bf16 rounding and is structurally benign.
    """
    B, Q, T = out_logits.shape
    C = positive_maps.shape[1]
    logits16 = out_logits.astype(jnp.bfloat16)
    prob_tok = jax.nn.sigmoid(logits16.astype(jnp.float32))
    prob = jnp.einsum('bqt,bct->bqc',
                      prob_tok.astype(jnp.bfloat16),
                      positive_maps.astype(jnp.bfloat16),
                      preferred_element_type=jnp.float32)
    prob = prob.astype(jnp.bfloat16).astype(jnp.float32)   # kernel writeback precision
    scores, topk_idx = jax.lax.top_k(prob.reshape(B, -1), num_select)
    topk_boxes = topk_idx // C
    labels = topk_idx % C
    if not_to_xyxy:
        boxes = out_bbox.astype(jnp.float32)
    else:
        cx, cy, w, h = jnp.split(out_bbox.astype(jnp.float32), 4, axis=-1)
        boxes = jnp.concatenate(
            [cx - 0.5 * w, cy - 0.5 * h, cx + 0.5 * w, cy + 0.5 * h], axis=-1)
    boxes = jnp.take_along_axis(
        boxes, jnp.broadcast_to(topk_boxes[..., None], (B, num_select, 4)), axis=1)
    topk_prob = jnp.take_along_axis(
        prob, jnp.broadcast_to(topk_boxes[..., None], (B, num_select, C)), axis=1)
    img_h = target_sizes[:, 0]
    img_w = target_sizes[:, 1]
    scale_fct = jnp.stack([img_w, img_h, img_w, img_h], axis=1).astype(jnp.float32)
    boxes = boxes * scale_fct[:, None, :]
    return {'scores': scores, 'labels': labels, 'boxes': boxes, 'prob': topk_prob}


# --------------------------------------------------------------------------- #
# Main
# --------------------------------------------------------------------------- #
if __name__ == "__main__":
    B, Q, T, C = 2, 16, 256, 8        # batch, num_queries, token dim, num_classes
    num_select = 8                     # torch hardcodes 300; scaled down with Q*C

    key = jax.random.PRNGKey(0)
    k1, k2 = jax.random.split(key)
    out_logits = jax.random.normal(k1, (B, Q, T), dtype=jnp.float32)
    out_bbox = jax.random.uniform(k2, (B, Q, 4), dtype=jnp.float32,
                                  minval=0.05, maxval=0.95)          # cxcywh in [0,1]
    target_sizes = jnp.array([[480.0, 640.0], [320.0, 512.0]], dtype=jnp.float32)
    positive_maps = build_positive_maps(B, C, T)

    fn = jax.jit(functools.partial(postprocess_coco, num_select=num_select))
    out = fn(out_logits, out_bbox, target_sizes, positive_maps)
    jax.block_until_ready(out)

    ref = postprocess_coco_ref(out_logits, out_bbox, target_sizes,
                               positive_maps, num_select)

    scores_k = np.asarray(out['scores'], dtype=np.float32)
    scores_r = np.asarray(ref['scores'], dtype=np.float32)
    np.testing.assert_allclose(scores_k, scores_r, rtol=1e-2, atol=1e-2)

    # Ranks whose reference score is separated from both neighbours by more
    # than the bf16 rounding noise floor must agree on the selected
    # (label, box, prob row); ties / near-ties are excluded.
    gap_lo = np.abs(np.diff(scores_r, axis=1, prepend=np.inf))
    gap_hi = np.abs(np.diff(scores_r, axis=1, append=-np.inf))
    stable = np.minimum(gap_lo, gap_hi) > 2e-2
    if stable.any():
        assert (np.asarray(out['labels']) == np.asarray(ref['labels']))[stable].all()
        np.testing.assert_allclose(np.asarray(out['boxes'])[stable],
                                   np.asarray(ref['boxes'])[stable],
                                   rtol=1e-5, atol=1e-4)
        np.testing.assert_allclose(np.asarray(out['prob'])[stable],
                                   np.asarray(ref['prob'])[stable],
                                   rtol=1e-2, atol=1e-2)

    # Structural sanity independent of tie stability.
    assert out['labels'].shape == (B, num_select)
    assert int(np.asarray(out['labels']).max()) < C          # padded classes never win
    assert out['boxes'].shape == (B, num_select, 4)
    assert out['prob'].shape == (B, num_select, C)
    print("KERNEL_OK")
</pallas_src>

<mosaic_0001>
module attributes {stable_mosaic.version = 11 : i64} {
  func.func @_postprocess_kernel(%arg0: i32, %arg1: i32, %arg2: memref<1x128x256xbf16, #tpu.memory_space<vmem>>, %arg3: memref<1x8x256xbf16, #tpu.memory_space<vmem>>, %arg4: memref<1x4x128xf32, #tpu.memory_space<vmem>>, %arg5: memref<1x8x128xbf16, #tpu.memory_space<vmem>>, %arg6: memref<1x4x128xf32, #tpu.memory_space<vmem>>) attributes {dimension_semantics = [#tpu.dimension_semantics<parallel>, #tpu.dimension_semantics<parallel>], iteration_bounds = array<i64: 2, 1>, scalar_prefetch = 0 : i64, scratch_operands = 0 : i64, tpu.core_type = #tpu.core_type<tc>, window_params = [{transform_indices = @transform_0, window_bounds = array<i64: 1, 128, 256>}, {transform_indices = @transform_1, window_bounds = array<i64: 1, 8, 256>}, {transform_indices = @transform_2, window_bounds = array<i64: 1, 4, 128>}, {transform_indices = @transform_3, window_bounds = array<i64: 1, 8, 128>}, {transform_indices = @transform_4, window_bounds = array<i64: 1, 4, 128>}]} {
    %c0 = arith.constant 0 : index
    %c0_0 = arith.constant 0 : index
    %c0_1 = arith.constant 0 : index
    %0 = vector.load %arg2[%c0, %c0_0, %c0_1] : memref<1x128x256xbf16, #tpu.memory_space<vmem>>, vector<1x128x256xbf16>
    %1 = arith.extf %0 : vector<1x128x256xbf16> to vector<1x128x256xf32>
    %2 = arith.negf %1 : vector<1x128x256xf32>
    %3 = math.exp %2 : vector<1x128x256xf32>
    %cst = arith.constant 1.000000e+00 : f32
    %4 = vector.broadcast %cst : f32 to vector<1x128x256xf32>
    %5 = arith.addf %4, %3 : vector<1x128x256xf32>
    %6 = arith.divf %4, %5 : vector<1x128x256xf32>
    %7 = arith.truncf %6 : vector<1x128x256xf32> to vector<1x128x256xbf16>
    %c0_2 = arith.constant 0 : index
    %c0_3 = arith.constant 0 : index
    %c0_4 = arith.constant 0 : index
    %8 = vector.load %arg3[%c0_2, %c0_3, %c0_4] : memref<1x8x256xbf16, #tpu.memory_space<vmem>>, vector<1x8x256xbf16>
    %cst_5 = arith.constant dense<0.000000e+00> : vector<1x8x128xf32>
    %9 = tpu.matmul %8, %7, %cst_5 {dimension_numbers = #tpu.dot_dimension_numbers<[2], [2], [1], [1], [0, 0, 0, 1, 1, 1], [0], [0]>} : vector<1x8x256xbf16>, vector<1x128x256xbf16>, vector<1x8x128xf32> -> vector<1x8x128xf32>
    %10 = tpu.iota {dimensions = array<i32: 1>} : vector<1x8x128xi32>
    %11 = tpu.iota {dimensions = array<i32: 2>} : vector<1x8x128xi32>
    %c128_i32 = arith.constant 128 : i32
    %12 = arith.muli %arg1, %c128_i32 : i32
    %13 = vector.broadcast %12 : i32 to vector<1x8x128xi32>
    %14 = arith.addi %11, %13 : vector<1x8x128xi32>
    %c8_i32 = arith.constant 8 : i32
    %15 = vector.broadcast %c8_i32 : i32 to vector<1x8x128xi32>
    %16 = arith.cmpi slt, %10, %15 : vector<1x8x128xi32>
    %c16_i32 = arith.constant 16 : i32
    %17 = vector.broadcast %c16_i32 : i32 to vector<1x8x128xi32>
    %18 = arith.cmpi slt, %14, %17 : vector<1x8x128xi32>
    %19 = arith.andi %16, %18 : vector<1x8x128xi1>
    %cst_6 = arith.constant -1.000000e+00 : f32
    %20 = vector.broadcast %cst_6 : f32 to vector<1x8x128xf32>
    %21 = arith.select %19, %9, %20 : vector<1x8x128xi1>, vector<1x8x128xf32>
    %22 = arith.truncf %21 : vector<1x8x128xf32> to vector<1x8x128xbf16>
    %c0_7 = arith.constant 0 : index
    %c0_8 = arith.constant 0 : index
    %c0_9 = arith.constant 0 : index
    %23 = vector.load %arg5[%c0_7, %c0_8, %c0_9] : memref<1x8x128xbf16, #tpu.memory_space<vmem>>, vector<1x8x128xbf16>
    tpu.vector_store %arg5[%c0_7, %c0_8, %c0_9], %22 {strides = array<i32>} : memref<1x8x128xbf16, #tpu.memory_space<vmem>>, vector<1x8x128xbf16>,
    %c0_10 = arith.constant 0 : index
    %c0_11 = arith.constant 0 : index
    %c0_12 = arith.constant 0 : index
    %24 = vector.load %arg4[%c0_10, %c0_11, %c0_12] : memref<1x4x128xf32, #tpu.memory_space<vmem>>, vector<1x4x128xf32>
    %25 = vector.extract_strided_slice %24 {offsets = [0, 0, 0], sizes = [1, 1, 128], strides = [1, 1, 1]} : vector<1x4x128xf32> to vector<1x1x128xf32>
    %26 = vector.extract_strided_slice %24 {offsets = [0, 1, 0], sizes = [1, 1, 128], strides = [1, 1, 1]} : vector<1x4x128xf32> to vector<1x1x128xf32>
    %27 = vector.extract_strided_slice %24 {offsets = [0, 2, 0], sizes = [1, 1, 128], strides = [1, 1, 1]} : vector<1x4x128xf32> to vector<1x1x128xf32>
    %28 = vector.extract_strided_slice %24 {offsets = [0, 3, 0], sizes = [1, 1, 128], strides = [1, 1, 1]} : vector<1x4x128xf32> to vector<1x1x128xf32>
    %cst_13 = arith.constant 5.000000e-01 : f32
    %29 = vector.broadcast %cst_13 : f32 to vector<1x1x128xf32>
    %30 = arith.mulf %29, %27 : vector<1x1x128xf32>
    %31 = arith.subf %25, %30 : vector<1x1x128xf32>
    %c0_14 = arith.constant 0 : index
    %c0_15 = arith.constant 0 : index
    %c0_16 = arith.constant 0 : index
    %32 = vector.load %arg6[%c0_14, %c0_15, %c0_16] : memref<1x4x128xf32, #tpu.memory_space<vmem>>, vector<1x1x128xf32>
    tpu.vector_store %arg6[%c0_14, %c0_15, %c0_16], %31 {strides = array<i32>} : memref<1x4x128xf32, #tpu.memory_space<vmem>>, vector<1x1x128xf32>,
    %cst_17 = arith.constant 5.000000e-01 : f32
    %33 = vector.broadcast %cst_17 : f32 to vector<1x1x128xf32>
    %34 = arith.mulf %33, %28 : vector<1x1x128xf32>
    %35 = arith.subf %26, %34 : vector<1x1x128xf32>
    %c0_18 = arith.constant 0 : index
    %c1 = arith.constant 1 : index
    %c0_19 = arith.constant 0 : index
    %36 = vector.load %arg6[%c0_18, %c1, %c0_19] : memref<1x4x128xf32, #tpu.memory_space<vmem>>, vector<1x1x128xf32>
    tpu.vector_store %arg6[%c0_18, %c1, %c0_19], %35 {strides = array<i32>} : memref<1x4x128xf32, #tpu.memory_space<vmem>>, vector<1x1x128xf32>,
    %cst_20 = arith.constant 5.000000e-01 : f32
    %37 = vector.broadcast %cst_20 : f32 to vector<1x1x128xf32>
    %38 = arith.mulf %37, %27 : vector<1x1x128xf32>
    %39 = arith.addf %25, %38 : vector<1x1x128xf32>
    %c0_21 = arith.constant 0 : index
    %c2 = arith.constant 2 : index
    %c0_22 = arith.constant 0 : index
    %40 = vector.load %arg6[%c0_21, %c2, %c0_22] : memref<1x4x128xf32, #tpu.memory_space<vmem>>, vector<1x1x128xf32>
    tpu.vector_store %arg6[%c0_21, %c2, %c0_22], %39 {strides = array<i32>} : memref<1x4x128xf32, #tpu.memory_space<vmem>>, vector<1x1x128xf32>,
    %cst_23 = arith.constant 5.000000e-01 : f32
    %41 = vector.broadcast %cst_23 : f32 to vector<1x1x128xf32>
    %42 = arith.mulf %41, %28 : vector<1x1x128xf32>
    %43 = arith.addf %26, %42 : vector<1x1x128xf32>
    %c0_24 = arith.constant 0 : index
    %c3 = arith.constant 3 : index
    %c0_25 = arith.constant 0 : index
    %44 = vector.load %arg6[%c0_24, %c3, %c0_25] : memref<1x4x128xf32, #tpu.memory_space<vmem>>, vector<1x1x128xf32>
    tpu.vector_store %arg6[%c0_24, %c3, %c0_25], %43 {strides = array<i32>} : memref<1x4x128xf32, #tpu.memory_space<vmem>>, vector<1x1x128xf32>,
    return
  }
  func.func @transform_0(%arg0: i32, %arg1: i32) -> (i32, i32, i32) {
    %c0_i32 = arith.constant 0 : i32
    %c0_i32_0 = arith.constant 0 : i32
    return %arg0, %arg1, %c0_i32 : i32, i32, i32
  }
  func.func @transform_1(%arg0: i32, %arg1: i32) -> (i32, i32, i32) {
    %c0_i32 = arith.constant 0 : i32
    %c0_i32_0 = arith.constant 0 : i32
    %c0_i32_1 = arith.constant 0 : i32
    return %arg0, %c0_i32, %c0_i32_0 : i32, i32, i32
  }
  func.func @transform_2(%arg0: i32, %arg1: i32) -> (i32, i32, i32) {
    %c0_i32 = arith.constant 0 : i32
    %c0_i32_0 = arith.constant 0 : i32
    return %arg0, %c0_i32, %arg1 : i32, i32, i32
  }
  func.func @transform_3(%arg0: i32, %arg1: i32) -> (i32, i32, i32) {
    %c0_i32 = arith.constant 0 : i32
    %c0_i32_0 = arith.constant 0 : i32
    return %arg0, %c0_i32, %arg1 : i32, i32, i32
  }
  func.func @transform_4(%arg0: i32, %arg1: i32) -> (i32, i32, i32) {
    %c0_i32 = arith.constant 0 : i32
    %c0_i32_0 = arith.constant 0 : i32
    return %arg0, %c0_i32, %arg1 : i32, i32, i32
  }
}

</mosaic_0001>

<llo_original>
// kernel: postprocess_coco.1
$region0: #{postprocess_coco.1}
  #allocation0 [shape = 'u32[]', space=smem, size = 0x4, offset = 0x4, fixed_abs, tag = 'smem constant byte address 0x4 - core index']
  #allocation1 [shape = 'u32[72,128]{1,0:T(1,128)}', space=vmem, size = 0x9000, scoped, tag = 'internal scratch']
  %s0 = inlined_call_operand.vmem [shape: bf16[2,128,256], index: 0, kind: input, shape index: {}]
  %s1 = inlined_call_operand.vmem [shape: bf16[2,8,256], index: 1, kind: input, shape index: {}]
  %s2 = inlined_call_operand.vmem [shape: f32[2,4,128], index: 2, kind: input, shape index: {}]
  %s3 = inlined_call_operand.vmem [shape: bf16[2,8,128], index: 3, kind: output, shape index: {0}]
  %s4 = inlined_call_operand.vmem [shape: f32[2,4,128], index: 4, kind: output, shape index: {1}]
  %5 = xla_tuple %s3, %s4
  %s6 = sld [smem:[#allocation0]]
  $region53: #{postprocess_coco.1} parent=0
    _
  %s8 = ssub.s32 1, %s6
  %s9 = scalar_select 0, %s8, %s6
  loop: start=0, step=1, limit=4
  $region2: #{postprocess_coco.1} parent=0 // loop_pre_header
    _
  $region3: #{postprocess_coco.1} parent=0 // loop_header
    %s11 = sphi 0, %s15
    %p12 = scmp.ge.s32.totalorder %s11, 4
    %s18 = sphi 0, %s30
    %s19 = sphi 0, %s26
    %s20 = sphi 0, %s18
    %s21 = sphi 0, %s19
    %s22 = sphi 0, %s20
    %s23 = sphi 0, %s21
    %s35 = sphi 0, %s37
    %s38 = sphi 0, %s35
    %s39 = sphi 0, %s38
    %s55 = sphi 0, %s39
    %s61 = sphi 0, %s63
    %s64 = sphi 0, %s61
    %s65 = sphi 0, %s64
    %s81 = sphi 0, %s65
    %s89 = sphi 0, %s91
    %s92 = sphi 0, %s89
    %s93 = sphi 0, %s92
    %s109 = sphi 0, %s93
    %s117 = sphi 0, %s119
    %s120 = sphi 0, %s117
    %s121 = sphi 0, %s120
    %s137 = sphi 0, %s121
    %s145 = sphi 0, %s147
    %s148 = sphi 0, %s145
    %s149 = sphi 0, %s148
    %s165 = sphi 0, %s149
  $region4: #{postprocess_coco.1} parent=0 // loop_header_branch
    %14 = sbr.rel (%p12) target = $region8
  $region5: #{postprocess_coco.1} parent=0 // loop_body
    %s16 = ssub.s32 %s11, 1
    %s17 = ssub.s32 %s11, 2
    %s24 = sadd.s32 1, %s19
    %p25 = scmp.ge.s32.totalorder %s24, 1
    %s26 = scalar_select %p25, 0, %s24
    %s27 = sadd.s32 1, %s18
    %s28 = scalar_select %p25, %s27, %s18
    %p29 = scmp.ge.s32.totalorder %s28, 2
    %s30 = scalar_select %p29, 0, %s28
    %s31 = ssub.s32 %s18, %s30
    %s32 = ssub.s32 %s19, %s26
    %s33 = sor.u32 %s31, %s32
    %p34 = scmp.eq.s32.totalorder %s33, 0
    %s36 = sadd.s32 %s35, 1
    %s37 = scalar_select %p34, %s35, %s36
    %p40 = pneg %p34
    %p41 = scmp.eq.s32.totalorder %s11, 1
    %p42 = por %p40, %p41
    %p43 = scmp.ne.s32.totalorder %s35, %s38
    %p44 = scmp.eq.s32.totalorder %s11, 0
    %p45 = por %p43, %p44
    %p46 = scmp.ne.s32.totalorder %s35, %s38
    %p47 = scmp.eq.s32.totalorder %s16, 1
    %p48 = por %p46, %p47
    %p49 = scmp.ne.s32.totalorder %s38, %s39
    %p50 = scmp.eq.s32.totalorder %s16, 0
    %p51 = por %p49, %p50
    %p52 = scmp.ne.s32.totalorder %s38, %s39
    %p53 = scmp.eq.s32.totalorder %s17, 1
    %p54 = por %p52, %p53
    %p56 = scmp.ne.s32.totalorder %s39, %s55
    %p57 = scmp.eq.s32.totalorder %s17, 0
    %p58 = por %p56, %p57
    %s59 = ssub.s32 %s18, %s30
    %p60 = scmp.eq.s32.totalorder %s59, 0
    %s62 = sadd.s32 %s61, 1
    %s63 = scalar_select %p60, %s61, %s62
    %p66 = pneg %p60
    %p67 = scmp.eq.s32.totalorder %s11, 1
    %p68 = por %p66, %p67
    %p69 = scmp.ne.s32.totalorder %s61, %s64
    %p70 = scmp.eq.s32.totalorder %s11, 0
    %p71 = por %p69, %p70
    %p72 = scmp.ne.s32.totalorder %s61, %s64
    %p73 = scmp.eq.s32.totalorder %s16, 1
    %p74 = por %p72, %p73
    %p75 = scmp.ne.s32.totalorder %s64, %s65
    %p76 = scmp.eq.s32.totalorder %s16, 0
    %p77 = por %p75, %p76
    %p78 = scmp.ne.s32.totalorder %s64, %s65
    %p79 = scmp.eq.s32.totalorder %s17, 1
    %p80 = por %p78, %p79
    %p82 = scmp.ne.s32.totalorder %s65, %s81
    %p83 = scmp.eq.s32.totalorder %s17, 0
    %p84 = por %p82, %p83
    %s85 = ssub.s32 %s18, %s30
    %s86 = ssub.s32 %s19, %s26
    %s87 = sor.u32 %s85, %s86
    %p88 = scmp.eq.s32.totalorder %s87, 0
    %s90 = sadd.s32 %s89, 1
    %s91 = scalar_select %p88, %s89, %s90
    %p94 = pneg %p88
    %p95 = scmp.eq.s32.totalorder %s11, 1
    %p96 = por %p94, %p95
    %p97 = scmp.ne.s32.totalorder %s89, %s92
    %p98 = scmp.eq.s32.totalorder %s11, 0
    %p99 = por %p97, %p98
    %p100 = scmp.ne.s32.totalorder %s89, %s92
    %p101 = scmp.eq.s32.totalorder %s16, 1
    %p102 = por %p100, %p101
    %p103 = scmp.ne.s32.totalorder %s92, %s93
    %p104 = scmp.eq.s32.totalorder %s16, 0
    %p105 = por %p103, %p104
    %p106 = scmp.ne.s32.totalorder %s92, %s93
    %p107 = scmp.eq.s32.totalorder %s17, 1
    %p108 = por %p106, %p107
    %p110 = scmp.ne.s32.totalorder %s93, %s109
    %p111 = scmp.eq.s32.totalorder %s17, 0
    %p112 = por %p110, %p111
    %s113 = ssub.s32 %s18, %s30
    %s114 = ssub.s32 %s19, %s26
    %s115 = sor.u32 %s113, %s114
    %p116 = scmp.eq.s32.totalorder %s115, 0
    %s118 = sadd.s32 %s117, 1
    %s119 = scalar_select %p116, %s117, %s118
    %p122 = pneg %p116
    %p123 = scmp.eq.s32.totalorder %s11, 1
    %p124 = por %p122, %p123
    %p125 = scmp.ne.s32.totalorder %s117, %s120
    %p126 = scmp.eq.s32.totalorder %s11, 0
    %p127 = por %p125, %p126
    %p128 = scmp.ne.s32.totalorder %s117, %s120
    %p129 = scmp.eq.s32.totalorder %s16, 1
    %p130 = por %p128, %p129
    %p131 = scmp.ne.s32.totalorder %s120, %s121
    %p132 = scmp.eq.s32.totalorder %s16, 0
    %p133 = por %p131, %p132
    %p134 = scmp.ne.s32.totalorder %s120, %s121
    %p135 = scmp.eq.s32.totalorder %s17, 1
    %p136 = por %p134, %p135
    %p138 = scmp.ne.s32.totalorder %s121, %s137
    %p139 = scmp.eq.s32.totalorder %s17, 0
    %p140 = por %p138, %p139
    %s141 = ssub.s32 %s18, %s30
    %s142 = ssub.s32 %s19, %s26
    %s143 = sor.u32 %s141, %s142
    %p144 = scmp.eq.s32.totalorder %s143, 0
    %s146 = sadd.s32 %s145, 1
    %s147 = scalar_select %p144, %s145, %s146
    %p150 = pneg %p144
    %p151 = scmp.eq.s32.totalorder %s11, 1
    %p152 = por %p150, %p151
    %p153 = scmp.ne.s32.totalorder %s145, %s148
    %p154 = scmp.eq.s32.totalorder %s11, 0
    %p155 = por %p153, %p154
    %p156 = scmp.ne.s32.totalorder %s145, %s148
    %p157 = scmp.eq.s32.totalorder %s16, 1
    %p158 = por %p156, %p157
    %p159 = scmp.ne.s32.totalorder %s148, %s149
    %p160 = scmp.eq.s32.totalorder %s16, 0
    %p161 = por %p159, %p160
    %p162 = scmp.ne.s32.totalorder %s148, %s149
    %p163 = scmp.eq.s32.totalorder %s17, 1
    %p164 = por %p162, %p163
    %p166 = scmp.ne.s32.totalorder %s149, %s165
    %p167 = scmp.eq.s32.totalorder %s17, 0
    %p168 = por %p166, %p167
    %p169 = scmp.le.s32.totalorder 1, %s11
    %p170 = scmp.lt.s32.totalorder %s11, 3
    %p171 = pnand %p169, %p170
    %p172 = pneg %p171
    // Predicated region
    $region9: #{postprocess_coco.1} parent=5 // pred_check
      _
    $region10: #{postprocess_coco.1} parent=5 // pred_check_branch
      %174 = sbr.rel (%p171) target = $region12
    $region11: #{postprocess_coco.1} parent=5 // pred_region
      %s175 = ssub.s32 %s11, 1
    $region12: #{postprocess_coco.1} parent=5 // pred_fallthru
      _
    %p176 = scmp.lt.s32.totalorder %s11, 2
    // Predicated region
    $region13: #{postprocess_coco.1} parent=5 // pred_check
      %p177 = pneg %p176
    $region14: #{postprocess_coco.1} parent=5 // pred_check_branch
      %179 = sbr.rel (%p177) target = $region16
    $region15: #{postprocess_coco.1} parent=5 // pred_region
      // Predicated region
      $region17: #{postprocess_coco.1} parent=15 // pred_check
        %p180 = pneg %p45
      $region18: #{postprocess_coco.1} parent=15 // pred_check_branch
        %182 = sbr.rel (%p180) target = $region20
      $region19: #{postprocess_coco.1} parent=15 // pred_region
        %s183 = smul.u32 16, %s19
        %p184 = scmp.lt.s32.totalorder %s18, 1
        %s185 = scalar_select %p184, %s18, 1
        %p186 = scmp.lt.s32.totalorder %s183, 15
        %s187 = scalar_select %p186, %s183, 15
        %s188 = smul.addr %s187, 2
        %s189 = smul.addr %s185, 32
        %s190 = sadd.s32 %s188, %s189
        %s191 = smul.addr %s190, 4
        %s192 = scalar_lea.vmem %s0, %s191
        %s193 = smul.u32 16, %s19
      $region20: #{postprocess_coco.1} parent=15 // pred_fallthru
        _
      // Predicated region
      $region21: #{postprocess_coco.1} parent=15 // pred_check
        %p194 = pneg %p71
      $region22: #{postprocess_coco.1} parent=15 // pred_check_branch
        %196 = sbr.rel (%p194) target = $region24
      $region23: #{postprocess_coco.1} parent=15 // pred_region
        %p197 = scmp.lt.s32.totalorder %s18, 1
        %s198 = scalar_select %p197, %s18, 1
        %s199 = smul.addr %s198, 2
        %s200 = smul.addr %s199, 4
        %s201 = scalar_lea.vmem %s1, %s200
      $region24: #{postprocess_coco.1} parent=15 // pred_fallthru
        _
      // Predicated region
      $region25: #{postprocess_coco.1} parent=15 // pred_check
        %p202 = pneg %p99
      $region26: #{postprocess_coco.1} parent=15 // pred_check_branch
        %204 = sbr.rel (%p202) target = $region28
      $region27: #{postprocess_coco.1} parent=15 // pred_region
        %p205 = scmp.lt.s32.totalorder %s18, 1
        %s206 = scalar_select %p205, %s18, 1
        %p207 = scmp.lt.s32.totalorder %s19, 0
        %s208 = scalar_select %p207, %s19, 0
        %s209 = sadd.s32 %s208, %s206
        %s210 = smul.addr %s209, 4
        %s211 = scalar_lea.vmem %s2, %s210
      $region28: #{postprocess_coco.1} parent=15 // pred_fallthru
        _
    $region16: #{postprocess_coco.1} parent=5 // pred_fallthru
      _
    %p212 = scmp.le.s32.totalorder 1, %s11
    %p213 = scmp.lt.s32.totalorder %s11, 3
    %p214 = pnand %p212, %p213
    %p215 = pneg %p214
    // Predicated region
    $region29: #{postprocess_coco.1} parent=5 // pred_check
      _
    $region30: #{postprocess_coco.1} parent=5 // pred_check_branch
      %217 = sbr.rel (%p214) target = $region32
    $region31: #{postprocess_coco.1} parent=5 // pred_region
      %s218 = ssub.s32 %s11, 1
      %s219 = smul.u32 16, %s21
      %p220 = scmp.lt.s32.totalorder %s20, 1
      %s221 = scalar_select %p220, %s20, 1
      %p222 = scmp.lt.s32.totalorder %s219, 15
      %s223 = scalar_select %p222, %s219, 15
      %s224 = smul.addr %s223, 2
      %s225 = smul.addr %s221, 32
      %s226 = sadd.s32 %s224, %s225
      %s227 = smul.addr %s226, 4
      %s228 = scalar_lea.vmem %s0, %s227
      %p229 = pneg %p51
      %p230 = pneg %p48
      %p231 = scmp.lt.s32.totalorder %s20, 1
      %s232 = scalar_select %p231, %s20, 1
      %s233 = smul.addr %s232, 2
      %s234 = smul.addr %s233, 4
      %s235 = scalar_lea.vmem %s1, %s234
      %p236 = pneg %p77
      %p237 = pneg %p74
      %p238 = scmp.lt.s32.totalorder %s20, 1
      %s239 = scalar_select %p238, %s20, 1
      %p240 = scmp.lt.s32.totalorder %s21, 0
      %s241 = scalar_select %p240, %s21, 0
      %s242 = sadd.s32 %s241, %s239
      %s243 = smul.addr %s242, 4
      %s244 = scalar_lea.vmem %s2, %s243
      %p245 = pneg %p105
      %p246 = pneg %p102
      %p247 = pneg %p133
      %p248 = pneg %p130
      %p249 = scmp.lt.s32.totalorder %s20, 1
      %s250 = scalar_select %p249, %s20, 1
      %p251 = scmp.lt.s32.totalorder %s21, 0
      %s252 = scalar_select %p251, %s21, 0
      %s253 = sadd.s32 %s252, %s250
      %s254 = smul.addr %s253, 4
      %s255 = scalar_lea.vmem %s3, %s254
      %p256 = pneg %p161
      %p257 = pneg %p158
      %p258 = scmp.lt.s32.totalorder %s20, 1
      %s259 = scalar_select %p258, %s20, 1
      %p260 = scmp.lt.s32.totalorder %s21, 0
      %s261 = scalar_select %p260, %s21, 0
      %s262 = sadd.s32 %s261, %s259
      %s263 = smul.addr %s262, 4
      %s264 = scalar_lea.vmem %s4, %s263
      %s265 = smul.u32 16, %s21
      %p266 = scmp.lt.s32.totalorder %s20, 1
      %s267 = scalar_select %p266, %s20, 1
      %p268 = scmp.lt.s32.totalorder %s265, 15
      %s269 = scalar_select %p268, %s265, 15
      %s270 = smul.addr %s269, 2
      %s271 = smul.addr %s267, 32
      %s272 = sadd.s32 %s270, %s271
      %s273 = smul.addr %s272, 4
      %s274 = scalar_lea.vmem %s0, %s273
      %s275 = smul.u32 16, %s21
      %p276 = scmp.lt.s32.totalorder %s20, 1
      %s277 = scalar_select %p276, %s20, 1
      %s278 = smul.addr %s277, 2
      %s279 = smul.addr %s278, 4
      %s280 = scalar_lea.vmem %s1, %s279
      %p281 = scmp.lt.s32.totalorder %s20, 1
      %s282 = scalar_select %p281, %s20, 1
      %p283 = scmp.lt.s32.totalorder %s21, 0
      %s284 = scalar_select %p283, %s21, 0
      %s285 = sadd.s32 %s284, %s282
      %s286 = smul.addr %s285, 4
      %s287 = scalar_lea.vmem %s2, %s286
      %p288 = scmp.lt.s32.totalorder %s20, 1
      %s289 = scalar_select %p288, %s20, 1
      %p290 = scmp.lt.s32.totalorder %s21, 0
      %s291 = scalar_select %p290, %s21, 0
      %s292 = sadd.s32 %s291, %s289
      %s293 = smul.addr %s292, 4
      %s294 = scalar_lea.vmem %s3, %s293
      %p295 = scmp.lt.s32.totalorder %s20, 1
      %s296 = scalar_select %p295, %s20, 1
      %p297 = scmp.lt.s32.totalorder %s21, 0
      %s298 = scalar_select %p297, %s21, 0
      %s299 = sadd.s32 %s298, %s296
      %s300 = smul.addr %s299, 4
      %s301 = scalar_lea.vmem %s4, %s300
      %v302 = vld [vmem:[%s274] sm:$0xff]
      %v303 = vld [vmem:[%s274 + $0x8] sm:$0xff]
      %v304 = vld [vmem:[%s274 + $0x10] sm:$0xff]
      %v305 = vld [vmem:[%s274 + $0x18] sm:$0xff]
      %v306 = vld [vmem:[%s274 + $0x20] sm:$0xff]
      %v307 = vld [vmem:[%s274 + $0x28] sm:$0xff]
      %v308 = vld [vmem:[%s274 + $0x30] sm:$0xff]
      %v309 = vld [vmem:[%s274 + $0x38] sm:$0xff]
      %v310 = vld [vmem:[%s274 + $0x40] sm:$0xff]
      %v311 = vld [vmem:[%s274 + $0x48] sm:$0xff]
      %v312 = vld [vmem:[%s274 + $0x50] sm:$0xff]
      %v313 = vld [vmem:[%s274 + $0x58] sm:$0xff]
      %v314 = vld [vmem:[%s274 + $0x60] sm:$0xff]
      %v315 = vld [vmem:[%s274 + $0x68] sm:$0xff]
      %v316 = vld [vmem:[%s274 + $0x70] sm:$0xff]
      %v317 = vld [vmem:[%s274 + $0x78] sm:$0xff]
      %v318 = vunpack.c.l.bf16 %v302
      %v319 = vunpack.c.h.bf16 %v302
      %v320 = vunpack.c.l.bf16 %v303
      %v321 = vunpack.c.h.bf16 %v303
      %v322 = vunpack.c.l.bf16 %v304
      %v323 = vunpack.c.h.bf16 %v304
      %v324 = vunpack.c.l.bf16 %v305
      %v325 = vunpack.c.h.bf16 %v305
      %v326 = vunpack.c.l.bf16 %v306
      %v327 = vunpack.c.h.bf16 %v306
      %v328 = vunpack.c.l.bf16 %v307
      %v329 = vunpack.c.h.bf16 %v307
      %v330 = vunpack.c.l.bf16 %v308
      %v331 = vunpack.c.h.bf16 %v308
      %v332 = vunpack.c.l.bf16 %v309
      %v333 = vunpack.c.h.bf16 %v309
      %v334 = vunpack.c.l.bf16 %v310
      %v335 = vunpack.c.h.bf16 %v310
      %v336 = vunpack.c.l.bf16 %v311
      %v337 = vunpack.c.h.bf16 %v311
      %v338 = vunpack.c.l.bf16 %v312
      %v339 = vunpack.c.h.bf16 %v312
      %v340 = vunpack.c.l.bf16 %v313
      %v341 = vunpack.c.h.bf16 %v313
      %v342 = vunpack.c.l.bf16 %v314
      %v343 = vunpack.c.h.bf16 %v314
      %v344 = vunpack.c.l.bf16 %v315
      %v345 = vunpack.c.h.bf16 %v315
      %v346 = vunpack.c.l.bf16 %v316
      %v347 = vunpack.c.h.bf16 %v316
      %v348 = vunpack.c.l.bf16 %v317
      %v349 = vunpack.c.h.bf16 %v317
      %v350 = vxor.u32 %v318, 2147483648
      %v351 = vxor.u32 %v319, 2147483648
      %v352 = vxor.u32 %v320, 2147483648
      %v353 = vxor.u32 %v321, 2147483648
      %v354 = vxor.u32 %v322, 2147483648
      %v355 = vxor.u32 %v323, 2147483648
      %v356 = vxor.u32 %v324, 2147483648
      %v357 = vxor.u32 %v325, 2147483648
      %v358 = vxor.u32 %v326, 2147483648
      %v359 = vxor.u32 %v327, 2147483648
      %v360 = vxor.u32 %v328, 2147483648
      %v361 = vxor.u32 %v329, 2147483648
      %v362 = vxor.u32 %v330, 2147483648
      %v363 = vxor.u32 %v331, 2147483648
      %v364 = vxor.u32 %v332, 2147483648
      %v365 = vxor.u32 %v333, 2147483648
      %v366 = vxor.u32 %v334, 2147483648
      %v367 = vxor.u32 %v335, 2147483648
      %v368 = vxor.u32 %v336, 2147483648
      %v369 = vxor.u32 %v337, 2147483648
      %v370 = vxor.u32 %v338, 2147483648
      %v371 = vxor.u32 %v339, 2147483648
      %v372 = vxor.u32 %v340, 2147483648
      %v373 = vxor.u32 %v341, 2147483648
      %v374 = vxor.u32 %v342, 2147483648
      %v375 = vxor.u32 %v343, 2147483648
      %v376 = vxor.u32 %v344, 2147483648
      %v377 = vxor.u32 %v345, 2147483648
      %v378 = vxor.u32 %v346, 2147483648
      %v379 = vxor.u32 %v347, 2147483648
      %v380 = vxor.u32 %v348, 2147483648
      %v381 = vxor.u32 %v349, 2147483648
      %v382 = vmul.f32 %v350, 1.442695
      %v383 = vpow.pop %v382
      %v384 = vmul.f32 %v351, 1.442695
      %v385 = vpow.pop %v384
      %v386 = vmul.f32 %v352, 1.442695
      %v387 = vpow.pop %v386
      %v388 = vmul.f32 %v353, 1.442695
      %v389 = vpow.pop %v388
      %v390 = vmul.f32 %v354, 1.442695
      %v391 = vpow.pop %v390
      %v392 = vmul.f32 %v355, 1.442695
      %v393 = vpow.pop %v392
      %v394 = vmul.f32 %v356, 1.442695
      %v395 = vpow.pop %v394
      %v396 = vmul.f32 %v357, 1.442695
      %v397 = vpow.pop %v396
      %v398 = vmul.f32 %v358, 1.442695
      %v399 = vpow.pop %v398
      %v400 = vmul.f32 %v359, 1.442695
      %v401 = vpow.pop %v400
      %v402 = vmul.f32 %v360, 1.442695
      %v403 = vpow.pop %v402
      %v404 = vmul.f32 %v361, 1.442695
      %v405 = vpow.pop %v404
      %v406 = vmul.f32 %v362, 1.442695
      %v407 = vpow.pop %v406
      %v408 = vmul.f32 %v363, 1.442695
      %v409 = vpow.pop %v408
      %v410 = vmul.f32 %v364, 1.442695
      %v411 = vpow.pop %v410
      %v412 = vmul.f32 %v365, 1.442695
      %v413 = vpow.pop %v412
      %v414 = vmul.f32 %v366, 1.442695
      %v415 = vpow.pop %v414
      %v416 = vmul.f32 %v367, 1.442695
      %v417 = vpow.pop %v416
      %v418 = vmul.f32 %v368, 1.442695
      %v419 = vpow.pop %v418
      %v420 = vmul.f32 %v369, 1.442695
      %v421 = vpow.pop %v420
      %v422 = vmul.f32 %v370, 1.442695
      %v423 = vpow.pop %v422
      %v424 = vmul.f32 %v371, 1.442695
      %v425 = vpow.pop %v424
      %v426 = vmul.f32 %v372, 1.442695
      %v427 = vpow.pop %v426
      %v428 = vmul.f32 %v373, 1.442695
      %v429 = vpow.pop %v428
      %v430 = vmul.f32 %v374, 1.442695
      %v431 = vpow.pop %v430
      %v432 = vmul.f32 %v375, 1.442695
      %v433 = vpow.pop %v432
      %v434 = vmul.f32 %v376, 1.442695
      %v435 = vpow.pop %v434
      %v436 = vmul.f32 %v377, 1.442695
      %v437 = vpow.pop %v436
      %v438 = vmul.f32 %v378, 1.442695
      %v439 = vpow.pop %v438
      %v440 = vmul.f32 %v379, 1.442695
      %v441 = vpow.pop %v440
      %v442 = vmul.f32 %v380, 1.442695
      %v443 = vpow.pop %v442
      %v444 = vmul.f32 %v381, 1.442695
      %v445 = vpow.pop %v444
      %v446 = vadd.f32 %v383, 1.0
      %v447 = vadd.f32 %v385, 1.0
      %v448 = vadd.f32 %v387, 1.0
      %v449 = vadd.f32 %v389, 1.0
      %v450 = vadd.f32 %v391, 1.0
      %v451 = vadd.f32 %v393, 1.0
      %v452 = vadd.f32 %v395, 1.0
      %v453 = vadd.f32 %v397, 1.0
      %v454 = vadd.f32 %v399, 1.0
      %v455 = vadd.f32 %v401, 1.0
      %v456 = vadd.f32 %v403, 1.0
      %v457 = vadd.f32 %v405, 1.0
      %v458 = vadd.f32 %v407, 1.0
      %v459 = vadd.f32 %v409, 1.0
      %v460 = vadd.f32 %v411, 1.0
      %v461 = vadd.f32 %v413, 1.0
      %v462 = vadd.f32 %v415, 1.0
      %v463 = vadd.f32 %v417, 1.0
      %v464 = vadd.f32 %v419, 1.0
      %v465 = vadd.f32 %v421, 1.0
      %v466 = vadd.f32 %v423, 1.0
      %v467 = vadd.f32 %v425, 1.0
      %v468 = vadd.f32 %v427, 1.0
      %v469 = vadd.f32 %v429, 1.0
      %v470 = vadd.f32 %v431, 1.0
      %v471 = vadd.f32 %v433, 1.0
      %v472 = vadd.f32 %v435, 1.0
      %v473 = vadd.f32 %v437, 1.0
      %v474 = vadd.f32 %v439, 1.0
      %v475 = vadd.f32 %v441, 1.0
      %v476 = vadd.f32 %v443, 1.0
      %v477 = vadd.f32 %v445, 1.0
      %v478 = vrcp.pop %v446
      %v479 = vmul.f32 %v446, %v478
      %v480 = vsub.f32 1.0, %v479
      %v481 = vmul.f32 %v478, %v480
      %v482 = vadd.f32 %v478, %v481
      %vm483 = vweird.f32 %v446
      %vm484 = vweird.f32 %v478
      %vm485 = vmor %vm483, %vm484
      %v486 = vsel %vm485, %v478, %v482
      %v487 = vand.u32 2147483647, %v446
      %vm488 = vcmp.eq.f32.partialorder %v487, 8.507059e+37
      %v489 = vand.u32 %v446, 2147483648
      %v490 = vor.u32 1.1754944e-38, %v489
      %v491 = vsel %vm488, %v490, %v486
      %v492 = vmul.f32 1.0, %v491
      %v493 = vrcp.pop %v447
      %v494 = vmul.f32 %v447, %v493
      %v495 = vsub.f32 1.0, %v494
      %v496 = vmul.f32 %v493, %v495
      %v497 = vadd.f32 %v493, %v496
      %vm498 = vweird.f32 %v447
      %vm499 = vweird.f32 %v493
      %vm500 = vmor %vm498, %vm499
      %v501 = vsel %vm500, %v493, %v497
      %v502 = vand.u32 2147483647, %v447
      %vm503 = vcmp.eq.f32.partialorder %v502, 8.507059e+37
      %v504 = vand.u32 %v447, 2147483648
      %v505 = vor.u32 1.1754944e-38, %v504
      %v506 = vsel %vm503, %v505, %v501
      %v507 = vmul.f32 1.0, %v506
      %v508 = vrcp.pop %v448
      %v509 = vmul.f32 %v448, %v508
      %v510 = vsub.f32 1.0, %v509
      %v511 = vmul.f32 %v508, %v510
      %v512 = vadd.f32 %v508, %v511
      %vm513 = vweird.f32 %v448
      %vm514 = vweird.f32 %v508
      %vm515 = vmor %vm513, %vm514
      %v516 = vsel %vm515, %v508, %v512
      %v517 = vand.u32 2147483647, %v448
      %vm518 = vcmp.eq.f32.partialorder %v517, 8.507059e+37
      %v519 = vand.u32 %v448, 2147483648
      %v520 = vor.u32 1.1754944e-38, %v519
      %v521 = vsel %vm518, %v520, %v516
      %v522 = vmul.f32 1.0, %v521
      %v523 = vrcp.pop %v449
      %v524 = vmul.f32 %v449, %v523
      %v525 = vsub.f32 1.0, %v524
      %v526 = vmul.f32 %v523, %v525
      %v527 = vadd.f32 %v523, %v526
      %vm528 = vweird.f32 %v449
      %vm529 = vweird.f32 %v523
      %vm530 = vmor %vm528, %vm529
      %v531 = vsel %vm530, %v523, %v527
      %v532 = vand.u32 2147483647, %v449
      %vm533 = vcmp.eq.f32.partialorder %v532, 8.507059e+37
      %v534 = vand.u32 %v449, 2147483648
      %v535 = vor.u32 1.1754944e-38, %v534
      %v536 = vsel %vm533, %v535, %v531
      %v537 = vmul.f32 1.0, %v536
      %v538 = vrcp.pop %v450
      %v539 = vmul.f32 %v450, %v538
      %v540 = vsub.f32 1.0, %v539
      %v541 = vmul.f32 %v538, %v540
      %v542 = vadd.f32 %v538, %v541
      %vm543 = vweird.f32 %v450
      %vm544 = vweird.f32 %v538
      %vm545 = vmor %vm543, %vm544
      %v546 = vsel %vm545, %v538, %v542
      %v547 = vand.u32 2147483647, %v450
      %vm548 = vcmp.eq.f32.partialorder %v547, 8.507059e+37
      %v549 = vand.u32 %v450, 2147483648
      %v550 = vor.u32 1.1754944e-38, %v549
      %v551 = vsel %vm548, %v550, %v546
      %v552 = vmul.f32 1.0, %v551
      %v553 = vrcp.pop %v451
      %v554 = vmul.f32 %v451, %v553
      %v555 = vsub.f32 1.0, %v554
      %v556 = vmul.f32 %v553, %v555
      %v557 = vadd.f32 %v553, %v556
      %vm558 = vweird.f32 %v451
      %vm559 = vweird.f32 %v553
      %vm560 = vmor %vm558, %vm559
      %v561 = vsel %vm560, %v553, %v557
      %v562 = vand.u32 2147483647, %v451
      %vm563 = vcmp.eq.f32.partialorder %v562, 8.507059e+37
      %v564 = vand.u32 %v451, 2147483648
      %v565 = vor.u32 1.1754944e-38, %v564
      %v566 = vsel %vm563, %v565, %v561
      %v567 = vmul.f32 1.0, %v566
      %v568 = vrcp.pop %v452
      %v569 = vmul.f32 %v452, %v568
      %v570 = vsub.f32 1.0, %v569
      %v571 = vmul.f32 %v568, %v570
      %v572 = vadd.f32 %v568, %v571
      %vm573 = vweird.f32 %v452
      %vm574 = vweird.f32 %v568
      %vm575 = vmor %vm573, %vm574
      %v576 = vsel %vm575, %v568, %v572
      %v577 = vand.u32 2147483647, %v452
      %vm578 = vcmp.eq.f32.partialorder %v577, 8.507059e+37
      %v579 = vand.u32 %v452, 2147483648
      %v580 = vor.u32 1.1754944e-38, %v579
      %v581 = vsel %vm578, %v580, %v576
      %v582 = vmul.f32 1.0, %v581
      %v583 = vrcp.pop %v453
      %v584 = vmul.f32 %v453, %v583
      %v585 = vsub.f32 1.0, %v584
      %v586 = vmul.f32 %v583, %v585
      %v587 = vadd.f32 %v583, %v586
      %vm588 = vweird.f32 %v453
      %vm589 = vweird.f32 %v583
      %vm590 = vmor %vm588, %vm589
      %v591 = vsel %vm590, %v583, %v587
      %v592 = vand.u32 2147483647, %v453
      %vm593 = vcmp.eq.f32.partialorder %v592, 8.507059e+37
      %v594 = vand.u32 %v453, 2147483648
      %v595 = vor.u32 1.1754944e-38, %v594
      %v596 = vsel %vm593, %v595, %v591
      %v597 = vmul.f32 1.0, %v596
      %v598 = vrcp.pop %v454
      %v599 = vmul.f32 %v454, %v598
      %v600 = vsub.f32 1.0, %v599
      %v601 = vmul.f32 %v598, %v600
      %v602 = vadd.f32 %v598, %v601
      %vm603 = vweird.f32 %v454
      %vm604 = vweird.f32 %v598
      %vm605 = vmor %vm603, %vm604
      %v606 = vsel %vm605, %v598, %v602
      %v607 = vand.u32 2147483647, %v454
      %vm608 = vcmp.eq.f32.partialorder %v607, 8.507059e+37
      %v609 = vand.u32 %v454, 2147483648
      %v610 = vor.u32 1.1754944e-38, %v609
      %v611 = vsel %vm608, %v610, %v606
      %v612 = vmul.f32 1.0, %v611
      %v613 = vrcp.pop %v455
      %v614 = vmul.f32 %v455, %v613
      %v615 = vsub.f32 1.0, %v614
      %v616 = vmul.f32 %v613, %v615
      %v617 = vadd.f32 %v613, %v616
      %vm618 = vweird.f32 %v455
      %vm619 = vweird.f32 %v613
      %vm620 = vmor %vm618, %vm619
      %v621 = vsel %vm620, %v613, %v617
      %v622 = vand.u32 2147483647, %v455
      %vm623 = vcmp.eq.f32.partialorder %v622, 8.507059e+37
      %v624 = vand.u32 %v455, 2147483648
      %v625 = vor.u32 1.1754944e-38, %v624
      %v626 = vsel %vm623, %v625, %v621
      %v627 = vmul.f32 1.0, %v626
      %v628 = vrcp.pop %v456
      %v629 = vmul.f32 %v456, %v628
      %v630 = vsub.f32 1.0, %v629
      %v631 = vmul.f32 %v628, %v630
      %v632 = vadd.f32 %v628, %v631
      %vm633 = vweird.f32 %v456
      %vm634 = vweird.f32 %v628
      %vm635 = vmor %vm633, %vm634
      %v636 = vsel %vm635, %v628, %v632
      %v637 = vand.u32 2147483647, %v456
      %vm638 = vcmp.eq.f32.partialorder %v637, 8.507059e+37
      %v639 = vand.u32 %v456, 2147483648
      %v640 = vor.u32 1.1754944e-38, %v639
      %v641 = vsel %vm638, %v640, %v636
      %v642 = vmul.f32 1.0, %v641
      %v643 = vrcp.pop %v457
      %v644 = vmul.f32 %v457, %v643
      %v645 = vsub.f32 1.0, %v644
      %v646 = vmul.f32 %v643, %v645
      %v647 = vadd.f32 %v643, %v646
      %vm648 = vweird.f32 %v457
      %vm649 = vweird.f32 %v643
      %vm650 = vmor %vm648, %vm649
      %v651 = vsel %vm650, %v643, %v647
      %v652 = vand.u32 2147483647, %v457
      %vm653 = vcmp.eq.f32.partialorder %v652, 8.507059e+37
      %v654 = vand.u32 %v457, 2147483648
      %v655 = vor.u32 1.1754944e-38, %v654
      %v656 = vsel %vm653, %v655, %v651
      %v657 = vmul.f32 1.0, %v656
      %v658 = vrcp.pop %v458
      %v659 = vmul.f32 %v458, %v658
      %v660 = vsub.f32 1.0, %v659
      %v661 = vmul.f32 %v658, %v660
      %v662 = vadd.f32 %v658, %v661
      %vm663 = vweird.f32 %v458
      %vm664 = vweird.f32 %v658
      %vm665 = vmor %vm663, %vm664
      %v666 = vsel %vm665, %v658, %v662
      %v667 = vand.u32 2147483647, %v458
      %vm668 = vcmp.eq.f32.partialorder %v667, 8.507059e+37
      %v669 = vand.u32 %v458, 2147483648
      %v670 = vor.u32 1.1754944e-38, %v669
      %v671 = vsel %vm668, %v670, %v666
      %v672 = vmul.f32 1.0, %v671
      %v673 = vrcp.pop %v459
      %v674 = vmul.f32 %v459, %v673
      %v675 = vsub.f32 1.0, %v674
      %v676 = vmul.f32 %v673, %v675
      %v677 = vadd.f32 %v673, %v676
      %vm678 = vweird.f32 %v459
      %vm679 = vweird.f32 %v673
      %vm680 = vmor %vm678, %vm679
      %v681 = vsel %vm680, %v673, %v677
      %v682 = vand.u32 2147483647, %v459
      %vm683 = vcmp.eq.f32.partialorder %v682, 8.507059e+37
      %v684 = vand.u32 %v459, 2147483648
      %v685 = vor.u32 1.1754944e-38, %v684
      %v686 = vsel %vm683, %v685, %v681
      %v687 = vmul.f32 1.0, %v686
      %v688 = vrcp.pop %v460
      %v689 = vmul.f32 %v460, %v688
      %v690 = vsub.f32 1.0, %v689
      %v691 = vmul.f32 %v688, %v690
      %v692 = vadd.f32 %v688, %v691
      %vm693 = vweird.f32 %v460
      %vm694 = vweird.f32 %v688
      %vm695 = vmor %vm693, %vm694
      %v696 = vsel %vm695, %v688, %v692
      %v697 = vand.u32 2147483647, %v460
      %vm698 = vcmp.eq.f32.partialorder %v697, 8.507059e+37
      %v699 = vand.u32 %v460, 2147483648
      %v700 = vor.u32 1.1754944e-38, %v699
      %v701 = vsel %vm698, %v700, %v696
      %v702 = vmul.f32 1.0, %v701
      %v703 = vrcp.pop %v461
      %v704 = vmul.f32 %v461, %v703
      %v705 = vsub.f32 1.0, %v704
      %v706 = vmul.f32 %v703, %v705
      %v707 = vadd.f32 %v703, %v706
      %vm708 = vweird.f32 %v461
      %vm709 = vweird.f32 %v703
      %vm710 = vmor %vm708, %vm709
      %v711 = vsel %vm710, %v703, %v707
      %v712 = vand.u32 2147483647, %v461
      %vm713 = vcmp.eq.f32.partialorder %v712, 8.507059e+37
      %v714 = vand.u32 %v461, 2147483648
      %v715 = vor.u32 1.1754944e-38, %v714
      %v716 = vsel %vm713, %v715, %v711
      %v717 = vmul.f32 1.0, %v716
      %v718 = vrcp.pop %v462
      %v719 = vmul.f32 %v462, %v718
      %v720 = vsub.f32 1.0, %v719
      %v721 = vmul.f32 %v718, %v720
      %v722 = vadd.f32 %v718, %v721
      %vm723 = vweird.f32 %v462
      %vm724 = vweird.f32 %v718
      %vm725 = vmor %vm723, %vm724
      %v726 = vsel %vm725, %v718, %v722
      %v727 = vand.u32 2147483647, %v462
      %vm728 = vcmp.eq.f32.partialorder %v727, 8.507059e+37
      %v729 = vand.u32 %v462, 2147483648
      %v730 = vor.u32 1.1754944e-38, %v729
      %v731 = vsel %vm728, %v730, %v726
      %v732 = vmul.f32 1.0, %v731
      %v733 = vrcp.pop %v463
      %v734 = vmul.f32 %v463, %v733
      %v735 = vsub.f32 1.0, %v734
      %v736 = vmul.f32 %v733, %v735
      %v737 = vadd.f32 %v733, %v736
      %vm738 = vweird.f32 %v463
      %vm739 = vweird.f32 %v733
      %vm740 = vmor %vm738, %vm739
      %v741 = vsel %vm740, %v733, %v737
      %v742 = vand.u32 2147483647, %v463
      %vm743 = vcmp.eq.f32.partialorder %v742, 8.507059e+37
      %v744 = vand.u32 %v463, 2147483648
      %v745 = vor.u32 1.1754944e-38, %v744
      %v746 = vsel %vm743, %v745, %v741
      %v747 = vmul.f32 1.0, %v746
      %v748 = vrcp.pop %v464
      %v749 = vmul.f32 %v464, %v748
      %v750 = vsub.f32 1.0, %v749
      %v751 = vmul.f32 %v748, %v750
      %v752 = vadd.f32 %v748, %v751
      %vm753 = vweird.f32 %v464
      %vm754 = vweird.f32 %v748
      %vm755 = vmor %vm753, %vm754
      %v756 = vsel %vm755, %v748, %v752
      %v757 = vand.u32 2147483647, %v464
      %vm758 = vcmp.eq.f32.partialorder %v757, 8.507059e+37
      %v759 = vand.u32 %v464, 2147483648
      %v760 = vor.u32 1.1754944e-38, %v759
      %v761 = vsel %vm758, %v760, %v756
      %v762 = vmul.f32 1.0, %v761
      %v763 = vrcp.pop %v465
      %v764 = vmul.f32 %v465, %v763
      %v765 = vsub.f32 1.0, %v764
      %v766 = vmul.f32 %v763, %v765
      %v767 = vadd.f32 %v763, %v766
      %vm768 = vweird.f32 %v465
      %vm769 = vweird.f32 %v763
      %vm770 = vmor %vm768, %vm769
      %v771 = vsel %vm770, %v763, %v767
      %v772 = vand.u32 2147483647, %v465
      %vm773 = vcmp.eq.f32.partialorder %v772, 8.507059e+37
      %v774 = vand.u32 %v465, 2147483648
      %v775 = vor.u32 1.1754944e-38, %v774
      %v776 = vsel %vm773, %v775, %v771
      %v777 = vmul.f32 1.0, %v776
      %v778 = vrcp.pop %v466
      %v779 = vmul.f32 %v466, %v778
      %v780 = vsub.f32 1.0, %v779
      %v781 = vmul.f32 %v778, %v780
      %v782 = vadd.f32 %v778, %v781
      %vm783 = vweird.f32 %v466
      %vm784 = vweird.f32 %v778
      %vm785 = vmor %vm783, %vm784
      %v786 = vsel %vm785, %v778, %v782
      %v787 = vand.u32 2147483647, %v466
      %vm788 = vcmp.eq.f32.partialorder %v787, 8.507059e+37
      %v789 = vand.u32 %v466, 2147483648
      %v790 = vor.u32 1.1754944e-38, %v789
      %v791 = vsel %vm788, %v790, %v786
      %v792 = vmul.f32 1.0, %v791
      %v793 = vrcp.pop %v467
      %v794 = vmul.f32 %v467, %v793
      %v795 = vsub.f32 1.0, %v794
      %v796 = vmul.f32 %v793, %v795
      %v797 = vadd.f32 %v793, %v796
      %vm798 = vweird.f32 %v467
      %vm799 = vweird.f32 %v793
      %vm800 = vmor %vm798, %vm799
      %v801 = vsel %vm800, %v793, %v797
      %v802 = vand.u32 2147483647, %v467
      %vm803 = vcmp.eq.f32.partialorder %v802, 8.507059e+37
      %v804 = vand.u32 %v467, 2147483648
      %v805 = vor.u32 1.1754944e-38, %v804
      %v806 = vsel %vm803, %v805, %v801
      %v807 = vmul.f32 1.0, %v806
      %v808 = vrcp.pop %v468
      %v809 = vmul.f32 %v468, %v808
      %v810 = vsub.f32 1.0, %v809
      %v811 = vmul.f32 %v808, %v810
      %v812 = vadd.f32 %v808, %v811
      %vm813 = vweird.f32 %v468
      %vm814 = vweird.f32 %v808
      %vm815 = vmor %vm813, %vm814
      %v816 = vsel %vm815, %v808, %v812
      %v817 = vand.u32 2147483647, %v468
      %vm818 = vcmp.eq.f32.partialorder %v817, 8.507059e+37
      %v819 = vand.u32 %v468, 2147483648
      %v820 = vor.u32 1.1754944e-38, %v819
      %v821 = vsel %vm818, %v820, %v816
      %v822 = vmul.f32 1.0, %v821
      %v823 = vrcp.pop %v469
      %v824 = vmul.f32 %v469, %v823
      %v825 = vsub.f32 1.0, %v824
      %v826 = vmul.f32 %v823, %v825
      %v827 = vadd.f32 %v823, %v826
      %vm828 = vweird.f32 %v469
      %vm829 = vweird.f32 %v823
      %vm830 = vmor %vm828, %vm829
      %v831 = vsel %vm830, %v823, %v827
      %v832 = vand.u32 2147483647, %v469
      %vm833 = vcmp.eq.f32.partialorder %v832, 8.507059e+37
      %v834 = vand.u32 %v469, 2147483648
      %v835 = vor.u32 1.1754944e-38, %v834
      %v836 = vsel %vm833, %v835, %v831
      %v837 = vmul.f32 1.0, %v836
      %v838 = vrcp.pop %v470
      %v839 = vmul.f32 %v470, %v838
      %v840 = vsub.f32 1.0, %v839
      %v841 = vmul.f32 %v838, %v840
      %v842 = vadd.f32 %v838, %v841
      %vm843 = vweird.f32 %v470
      %vm844 = vweird.f32 %v838
      %vm845 = vmor %vm843, %vm844
      %v846 = vsel %vm845, %v838, %v842
      %v847 = vand.u32 2147483647, %v470
      %vm848 = vcmp.eq.f32.partialorder %v847, 8.507059e+37
      %v849 = vand.u32 %v470, 2147483648
      %v850 = vor.u32 1.1754944e-38, %v849
      %v851 = vsel %vm848, %v850, %v846
      %v852 = vmul.f32 1.0, %v851
      %v853 = vrcp.pop %v471
      %v854 = vmul.f32 %v471, %v853
      %v855 = vsub.f32 1.0, %v854
      %v856 = vmul.f32 %v853, %v855
      %v857 = vadd.f32 %v853, %v856
      %vm858 = vweird.f32 %v471
      %vm859 = vweird.f32 %v853
      %vm860 = vmor %vm858, %vm859
      %v861 = vsel %vm860, %v853, %v857
      %v862 = vand.u32 2147483647, %v471
      %vm863 = vcmp.eq.f32.partialorder %v862, 8.507059e+37
      %v864 = vand.u32 %v471, 2147483648
      %v865 = vor.u32 1.1754944e-38, %v864
      %v866 = vsel %vm863, %v865, %v861
      %v867 = vmul.f32 1.0, %v866
      %v868 = vrcp.pop %v472
      %v869 = vmul.f32 %v472, %v868
      %v870 = vsub.f32 1.0, %v869
      %v871 = vmul.f32 %v868, %v870
      %v872 = vadd.f32 %v868, %v871
      %vm873 = vweird.f32 %v472
      %vm874 = vweird.f32 %v868
      %vm875 = vmor %vm873, %vm874
      %v876 = vsel %vm875, %v868, %v872
      %v877 = vand.u32 2147483647, %v472
      %vm878 = vcmp.eq.f32.partialorder %v877, 8.507059e+37
      %v879 = vand.u32 %v472, 2147483648
      %v880 = vor.u32 1.1754944e-38, %v879
      %v881 = vsel %vm878, %v880, %v876
      %v882 = vmul.f32 1.0, %v881
      %v883 = vrcp.pop %v473
      %v884 = vmul.f32 %v473, %v883
      %v885 = vsub.f32 1.0, %v884
      %v886 = vmul.f32 %v883, %v885
      %v887 = vadd.f32 %v883, %v886
      %vm888 = vweird.f32 %v473
      %vm889 = vweird.f32 %v883
      %vm890 = vmor %vm888, %vm889
      %v891 = vsel %vm890, %v883, %v887
      %v892 = vand.u32 2147483647, %v473
      %vm893 = vcmp.eq.f32.partialorder %v892, 8.507059e+37
      %v894 = vand.u32 %v473, 2147483648
      %v895 = vor.u32 1.1754944e-38, %v894
      %v896 = vsel %vm893, %v895, %v891
      %v897 = vmul.f32 1.0, %v896
      %v898 = vrcp.pop %v474
      %v899 = vmul.f32 %v474, %v898
      %v900 = vsub.f32 1.0, %v899
      %v901 = vmul.f32 %v898, %v900
      %v902 = vadd.f32 %v898, %v901
      %vm903 = vweird.f32 %v474
      %vm904 = vweird.f32 %v898
      %vm905 = vmor %vm903, %vm904
      %v906 = vsel %vm905, %v898, %v902
      %v907 = vand.u32 2147483647, %v474
      %vm908 = vcmp.eq.f32.partialorder %v907, 8.507059e+37
      %v909 = vand.u32 %v474, 2147483648
      %v910 = vor.u32 1.1754944e-38, %v909
      %v911 = vsel %vm908, %v910, %v906
      %v912 = vmul.f32 1.0, %v911
      %v913 = vrcp.pop %v475
      %v914 = vmul.f32 %v475, %v913
      %v915 = vsub.f32 1.0, %v914
      %v916 = vmul.f32 %v913, %v915
      %v917 = vadd.f32 %v913, %v916
      %vm918 = vweird.f32 %v475
      %vm919 = vweird.f32 %v913
      %vm920 = vmor %vm918, %vm919
      %v921 = vsel %vm920, %v913, %v917
      %v922 = vand.u32 2147483647, %v475
      %vm923 = vcmp.eq.f32.partialorder %v922, 8.507059e+37
      %v924 = vand.u32 %v475, 2147483648
      %v925 = vor.u32 1.1754944e-38, %v924
      %v926 = vsel %vm923, %v925, %v921
      %v927 = vmul.f32 1.0, %v926
      %v928 = vrcp.pop %v476
      %v929 = vmul.f32 %v476, %v928
      %v930 = vsub.f32 1.0, %v929
      %v931 = vmul.f32 %v928, %v930
      %v932 = vadd.f32 %v928, %v931
      %vm933 = vweird.f32 %v476
      %vm934 = vweird.f32 %v928
      %vm935 = vmor %vm933, %vm934
      %v936 = vsel %vm935, %v928, %v932
      %v937 = vand.u32 2147483647, %v476
      %vm938 = vcmp.eq.f32.partialorder %v937, 8.507059e+37
      %v939 = vand.u32 %v476, 2147483648
      %v940 = vor.u32 1.1754944e-38, %v939
      %v941 = vsel %vm938, %v940, %v936
      %v942 = vmul.f32 1.0, %v941
      %v943 = vrcp.pop %v477
      %v944 = vmul.f32 %v477, %v943
      %v945 = vsub.f32 1.0, %v944
      %v946 = vmul.f32 %v943, %v945
      %v947 = vadd.f32 %v943, %v946
      %vm948 = vweird.f32 %v477
      %vm949 = vweird.f32 %v943
      %vm950 = vmor %vm948, %vm949
      %v951 = vsel %vm950, %v943, %v947
      %v952 = vand.u32 2147483647, %v477
      %vm953 = vcmp.eq.f32.partialorder %v952, 8.507059e+37
      %v954 = vand.u32 %v477, 2147483648
      %v955 = vor.u32 1.1754944e-38, %v954
      %v956 = vsel %vm953, %v955, %v951
      %v957 = vmul.f32 1.0, %v956
      %v958 = vpack.c.bf16 %v507, %v492
      %v959 = vpack.c.bf16 %v537, %v522
      %v960 = vpack.c.bf16 %v567, %v552
      %v961 = vpack.c.bf16 %v597, %v582
      %v962 = vpack.c.bf16 %v627, %v612
      %v963 = vpack.c.bf16 %v657, %v642
      %v964 = vpack.c.bf16 %v687, %v672
      %v965 = vpack.c.bf16 %v717, %v702
      %v966 = vpack.c.bf16 %v747, %v732
      %v967 = vpack.c.bf16 %v777, %v762
      %v968 = vpack.c.bf16 %v807, %v792
      %v969 = vpack.c.bf16 %v837, %v822
      %v970 = vpack.c.bf16 %v867, %v852
      %v971 = vpack.c.bf16 %v897, %v882
      %v972 = vpack.c.bf16 %v927, %v912
      %v973 = vpack.c.bf16 %v957, %v942
      %v974 = vld [vmem:[%s280] sm:$0xff]
      %v976 = vunpack.c.l.b16 %v974
      %v977 = vunpack.c.h.b16 %v974
      %v978 = vpack.c.b16 %v976, %v976
      %v979 = vpack.c.b16 %v977, %v977
      %v998 = vunpack.c.l.b16 %v958
      %v999 = vunpack.c.h.b16 %v958
      %v1000 = vunpack.c.l.b16 %v959
      %v1001 = vunpack.c.h.b16 %v959
      %v1002 = vunpack.c.l.b16 %v960
      %v1003 = vunpack.c.h.b16 %v960
      %v1004 = vunpack.c.l.b16 %v961
      %v1005 = vunpack.c.h.b16 %v961
      %v1006 = vunpack.c.l.b16 %v962
      %v1007 = vunpack.c.h.b16 %v962
      %v1008 = vunpack.c.l.b16 %v963
      %v1009 = vunpack.c.h.b16 %v963
      %v1010 = vunpack.c.l.b16 %v964
      %v1011 = vunpack.c.h.b16 %v964
      %v1012 = vunpack.c.l.b16 %v965
      %v1013 = vunpack.c.h.b16 %v965
      %v1014 = vunpack.c.l.b16 %v966
      %v1015 = vunpack.c.h.b16 %v966
      %v1016 = vunpack.c.l.b16 %v967
      %v1017 = vunpack.c.h.b16 %v967
      %v1018 = vunpack.c.l.b16 %v968
      %v1019 = vunpack.c.h.b16 %v968
      %v1020 = vunpack.c.l.b16 %v969
      %v1021 = vunpack.c.h.b16 %v969
      %v1022 = vunpack.c.l.b16 %v970
      %v1023 = vunpack.c.h.b16 %v970
      %v1024 = vunpack.c.l.b16 %v971
      %v1025 = vunpack.c.h.b16 %v971
      %v1026 = vunpack.c.l.b16 %v972
      %v1027 = vunpack.c.h.b16 %v972
      %v1028 = vunpack.c.l.b16 %v973
      %v1029 = vunpack.c.h.b16 %v973
      %v1030 = vpack.c.b16 %v1000, %v998
      %v1031 = vpack.c.b16 %v1001, %v999
      %v1032 = vpack.c.b16 %v1004, %v1002
      %v1033 = vpack.c.b16 %v1005, %v1003
      %v1034 = vpack.c.b16 %v1008, %v1006
      %v1035 = vpack.c.b16 %v1009, %v1007
      %v1036 = vpack.c.b16 %v1012, %v1010
      %v1037 = vpack.c.b16 %v1013, %v1011
      %v1038 = vpack.c.b16 %v1016, %v1014
      %v1039 = vpack.c.b16 %v1017, %v1015
      %v1040 = vpack.c.b16 %v1020, %v1018
      %v1041 = vpack.c.b16 %v1021, %v1019
      %v1042 = vpack.c.b16 %v1024, %v1022
      %v1043 = vpack.c.b16 %v1025, %v1023
      %v1044 = vpack.c.b16 %v1028, %v1026
      %v1045 = vpack.c.b16 %v1029, %v1027
      %1062 = vmatpush.bf16.xpose.msra.mxu0 %v1044
      %1063 = vmatpush.bf16.xpose.msra.mxu0 %v1042
      %1064 = vmatpush.bf16.xpose.msra.mxu0 %v1040
      %1065 = vmatpush.bf16.xpose.msra.mxu0 %v1038
      %1066 = vmatpush.bf16.xpose.msra.mxu0 %v1036
      %1067 = vmatpush.bf16.xpose.msra.mxu0 %v1034
      %1068 = vmatpush.bf16.xpose.msra.mxu0 %v1032
      %1069 = vmatpush.bf16.xpose.msra.mxu0 %v1030
      %1070 = vmatmul.bf16.gmra.mxu0 %v978
      %v1071 = vpop.f32.mrf.mxu0
      %v1072 = vadd.f32 0.0, %v1071
      %v1073 = vpop.f32.mrf.mxu0
      %1074 = vdwg.mxu0
      %1075 = vmatpush.bf16.xpose.msra.mxu0 %v1045
      %1076 = vmatpush.bf16.xpose.msra.mxu0 %v1043
      %1077 = vmatpush.bf16.xpose.msra.mxu0 %v1041
      %1078 = vmatpush.bf16.xpose.msra.mxu0 %v1039
      %1079 = vmatpush.bf16.xpose.msra.mxu0 %v1037
      %1080 = vmatpush.bf16.xpose.msra.mxu0 %v1035
      %1081 = vmatpush.bf16.xpose.msra.mxu0 %v1033
      %1082 = vmatpush.bf16.xpose.msra.mxu0 %v1031
      %1083 = vmatmul.bf16.gmra.mxu0 %v979
      %v1084 = vpop.f32.mrf.mxu0
      %v1085 = vadd.f32 %v1072, %v1084
      %v1086 = vpop.f32.mrf.mxu0
      %1087 = vdwg.mxu0
      %v1088 = vlaneseq
      %v1089 = vshrl.u32 %v1088, 7
      %v1090 = vlaneseq
      %v1091 = vand.u32 %v1090, 127
      %s1092 = smul.u32 %s21, 128
      %v1093 = vstv %s1092
      %v1094 = vadd.s32 %v1091, %v1093
      %vm1095 = vcmp.lt.s32.totalorder %v1089, 8
      %vm1096 = vcmp.lt.s32.totalorder %v1094, 16
      %vm1097 = vmand %vm1095, %vm1096
      %v1098 = vsel %vm1097, %v1085, -1.0
      %v1099 = vpack.c.bf16 %v1098, %v1098
      %1100 = vst [vmem:[%s294] sm:$0xf] %v1099
      %v1101 = vld [vmem:[%s287] sm:$0xf]
      %v1102 = vmul.f32 %v1101, 0.5
      %v1104 = vrot.slane %v1102, 2
      %v1106 = vsub.f32 %v1101, %v1104
      %1107 = vst [vmem:[%s301] sm:$0x1] %v1106
      %1108 = vst [vmem:[%s301] sm:$0x2] %v1106
      %v1109 = vadd.f32 %v1101, %v1104
      %1110 = vst [vmem:[%s301 + $0x2] sm:$0x1] %v1109
      %1111 = vst [vmem:[%s301 + $0x2] sm:$0x2] %v1109
      %p1112 = scmp.lt.s32.totalorder %s20, 1
      %s1113 = scalar_select %p1112, %s20, 1
      %p1114 = scmp.lt.s32.totalorder %s21, 0
      %s1115 = scalar_select %p1114, %s21, 0
      %s1116 = sadd.s32 %s1115, %s1113
      %s1117 = smul.addr %s1116, 4
      %s1118 = scalar_lea.vmem %s3, %s1117
      %p1119 = scmp.lt.s32.totalorder %s20, 1
      %s1120 = scalar_select %p1119, %s20, 1
      %p1121 = scmp.lt.s32.totalorder %s21, 0
      %s1122 = scalar_select %p1121, %s21, 0
      %s1123 = sadd.s32 %s1122, %s1120
      %s1124 = smul.addr %s1123, 4
      %s1125 = scalar_lea.vmem %s4, %s1124
      // Predicated region
      $region33: #{postprocess_coco.1} parent=31 // pred_check
        %p1126 = pneg %p130
      $region34: #{postprocess_coco.1} parent=31 // pred_check_branch
        %1128 = sbr.rel (%p1126) target = $region36
      $region35: #{postprocess_coco.1} parent=31 // pred_region
        _
      $region36: #{postprocess_coco.1} parent=31 // pred_fallthru
        _
      // Predicated region
      $region37: #{postprocess_coco.1} parent=31 // pred_check
        %p1129 = pneg %p158
      $region38: #{postprocess_coco.1} parent=31 // pred_check_branch
        %1131 = sbr.rel (%p1129) target = $region40
      $region39: #{postprocess_coco.1} parent=31 // pred_region
        _
      $region40: #{postprocess_coco.1} parent=31 // pred_fallthru
        _
    $region32: #{postprocess_coco.1} parent=5 // pred_fallthru
      _
    %p1132 = scmp.le.s32.totalorder 2, %s11
    // Predicated region
    $region41: #{postprocess_coco.1} parent=5 // pred_check
      %p1133 = pneg %p1132
    $region42: #{postprocess_coco.1} parent=5 // pred_check_branch
      %1135 = sbr.rel (%p1133) target = $region44
    $region43: #{postprocess_coco.1} parent=5 // pred_region
      %s1136 = ssub.s32 %s11, 2
      // Predicated region
      $region45: #{postprocess_coco.1} parent=43 // pred_check
        %p1137 = pneg %p136
      $region46: #{postprocess_coco.1} parent=43 // pred_check_branch
        %1139 = sbr.rel (%p1137) target = $region48
      $region47: #{postprocess_coco.1} parent=43 // pred_region
        %p1140 = scmp.lt.s32.totalorder %s22, 1
        %s1141 = scalar_select %p1140, %s22, 1
        %p1142 = scmp.lt.s32.totalorder %s23, 0
        %s1143 = scalar_select %p1142, %s23, 0
        %s1144 = sadd.s32 %s1143, %s1141
        %s1145 = smul.addr %s1144, 4
        %s1146 = scalar_lea.vmem %s3, %s1145
      $region48: #{postprocess_coco.1} parent=43 // pred_fallthru
        _
      // Predicated region
      $region49: #{postprocess_coco.1} parent=43 // pred_check
        %p1147 = pneg %p164
      $region50: #{postprocess_coco.1} parent=43 // pred_check_branch
        %1149 = sbr.rel (%p1147) target = $region52
      $region51: #{postprocess_coco.1} parent=43 // pred_region
        %p1150 = scmp.lt.s32.totalorder %s22, 1
        %s1151 = scalar_select %p1150, %s22, 1
        %p1152 = scmp.lt.s32.totalorder %s23, 0
        %s1153 = scalar_select %p1152, %s23, 0
        %s1154 = sadd.s32 %s1153, %s1151
        %s1155 = smul.addr %s1154, 4
        %s1156 = scalar_lea.vmem %s4, %s1155
      $region52: #{postprocess_coco.1} parent=43 // pred_fallthru
        _
    $region44: #{postprocess_coco.1} parent=5 // pred_fallthru
      _
  $region6: #{postprocess_coco.1} parent=0 // loop_footer
    %s15 = sadd.s32 1, %s11
  $region7: #{postprocess_coco.1} parent=0 // loop_footer_branch
    %10 = sbr.rel target = $region3
  $region8: #{postprocess_coco.1} parent=0 // loop_exit
    _

</llo_original>
